<compile_context>
chip_gen: v5e
topology: v5e:2x2
jax: 0.10.0
libtpu: 0.0.40
codegen_flags: <defaults>
</compile_context>

<pallas_src>
import math

import jax
import jax.numpy as jnp
from jax.experimental import pallas as pl
from jax.experimental.pallas import tpu as pltpu


# -----------------------------------------------------------------------------
# Pallas kernel factory: whole MLP in feature-major layout
# -----------------------------------------------------------------------------
def _make_kernel(*, d_in, W, D, skips, use_bf16):
    """kernel(x_ref, w_x_ref, w_h_ref, b_ref, w_last_ref, b_last_ref, out_ref)

    x_ref      : (d_in, tb)      streamed point block (batch on lanes)
    w_x_ref    : (n_x, W, d_in)  x-weights for layer 0 and each skip layer
    w_h_ref    : (D-1, W, W)     h-weights for hidden layers 1..D-1
    b_ref      : (W, D)          per-layer effective biases (t-term pre-folded)
    w_last_ref : (d_out, W)      final linear layer
    b_last_ref : (d_out, 1)
    out_ref    : (d_in, tb)      x + delta_x
    """
    skips = tuple(skips)

    def matmul(w, h):
        if use_bf16:
            return jnp.dot(w.astype(jnp.bfloat16), h.astype(jnp.bfloat16),
                           preferred_element_type=jnp.float32)
        return jnp.dot(w, h, preferred_element_type=jnp.float32)

    def kernel(x_ref, w_x_ref, w_h_ref, b_ref, w_last_ref, b_last_ref, out_ref):
        x = x_ref[...]                                    # (d_in, tb), f32

        def x_contrib(slot):
            # K = d_in (=3) is tiny: do it on the VPU as d_in broadcast FMAs
            # instead of an MXU matmul.
            wx = w_x_ref[slot]                            # (W, d_in)
            acc = wx[:, 0:1] * x[0:1, :]                  # (W,1)*(1,tb) -> (W,tb)
            for j in range(1, d_in):
                acc = acc + wx[:, j:j + 1] * x[j:j + 1, :]
            return acc

        # layer 0 (t-term already folded into bias column 0)
        h = jnp.maximum(x_contrib(0) + b_ref[:, 0:1], 0.0)

        slot = 1
        for l in range(1, D):
            hh = matmul(w_h_ref[l - 1], h)                # (W, tb) on the MXU
            if l in skips:
                hh = hh + x_contrib(slot)
                slot += 1
            h = jnp.maximum(hh + b_ref[:, l:l + 1], 0.0)  # bias + ReLU (DenseLayer)

        delta = matmul(w_last_ref[...], h) + b_last_ref[...]   # (d_out, tb), no ReLU
        out_ref[...] = x + delta                          # residual warp

    return kernel


# -----------------------------------------------------------------------------
# Wrapper
# -----------------------------------------------------------------------------
def so_deforma_net_forward(t, x, alpha_ratio, params, skips, *,
                           batch_tile=2048, use_bf16_matmul=False):
    """t: (1, d_feature), x: (B, d_in).

    params: list of (W, b) in PyTorch nn.Linear layout: W is (out, in), b is (out,).
    Returns (B, d_in) warped points.
    """
    del alpha_ratio  # multires=0 => identity embedder; annealing unused
    skips = tuple(skips)
    B, d_in = x.shape
    d_feature = t.shape[-1]
    D = len(params) - 1                      # number of hidden (ReLU) layers
    W = params[0][0].shape[0]
    d_out = params[D][0].shape[0]

    assert d_out == d_in, "residual add requires final out_dim == d_in"
    assert 0 not in skips, "skip at layer 0 is not supported (mirrors PyTorch)"
    assert D not in skips, "skip at the final layer is not supported"
    assert D >= 2, "need at least two hidden layers"

    x = x.astype(jnp.float32)
    t = t.astype(jnp.float32)
    t_col = t.reshape(d_feature, 1)

    # --- parameter preprocessing (batch-invariant, done once outside the kernel) --
    # Fold the t-contribution into the bias of layer 0 and of every skip layer,
    # slice out the tiny W_x pieces, and stack everything into a few large refs.
    w_x_list, w_h_list, b_cols = [], [], []
    for l in range(D):
        w, b = params[l]
        w = w.astype(jnp.float32)
        b = b.astype(jnp.float32).reshape(-1)
        if l == 0:
            w_x, w_t = w[:, :d_in], w[:, d_in:]
            w_x_list.append(w_x)
            b_cols.append((w_t @ t_col)[:, 0] + b)
        elif l in skips:
            w_h, w_x, w_t = w[:, :W], w[:, W:W + d_in], w[:, W + d_in:]
            w_h_list.append(w_h)
            w_x_list.append(w_x)
            b_cols.append((w_t @ t_col)[:, 0] + b)
        else:
            w_h_list.append(w)
            b_cols.append(b)
    w_last, b_last = params[D]
    w_last = w_last.astype(jnp.float32)                    # (d_out, W)
    b_last = b_last.astype(jnp.float32).reshape(d_out, 1)  # (d_out, 1)

    w_x_stack = jnp.stack(w_x_list)          # (n_x, W, d_in)
    w_h_stack = jnp.stack(w_h_list)          # (D-1, W, W)
    b_all = jnp.stack(b_cols, axis=1)        # (W, D)

    # --- feature-major activations: batch on lanes --------------------------------
    x_t = x.T                                # (d_in, B); cheap layout plumbing

    tb = max(128, min(batch_tile, pl.cdiv(B, 128) * 128))  # lane-dim multiple of 128
    n_tiles = pl.cdiv(B, tb)                 # partial last block masked by Pallas
    grid = (n_tiles,)

    consts = [w_x_stack, w_h_stack, b_all, w_last, b_last]
    const_specs = [pl.BlockSpec(c.shape, lambda i, n=c.ndim: (0,) * n)
                   for c in consts]

    kernel = _make_kernel(d_in=d_in, W=W, D=D, skips=skips, use_bf16=use_bf16_matmul)

    # --- cost estimate -------------------------------------------------------------
    macs = W * d_in
    for l in range(1, D):
        macs += W * W + (W * d_in if l in skips else 0)
    macs += d_out * W
    flops = 2 * B * macs
    bytes_accessed = 2 * B * d_in * 4 + sum(c.size for c in consts) * 4

    out_t = pl.pallas_call(
        kernel,
        out_shape=jax.ShapeDtypeStruct((d_in, B), jnp.float32),
        grid_spec=pltpu.PrefetchScalarGridSpec(
            num_scalar_prefetch=0,
            grid=grid,
            in_specs=[pl.BlockSpec((d_in, tb), lambda i: (0, i))] + const_specs,
            out_specs=pl.BlockSpec((d_in, tb), lambda i: (0, i)),
        ),
        compiler_params=pltpu.CompilerParams(
            dimension_semantics=("parallel",),
        ),
        cost_estimate=pl.CostEstimate(
            flops=flops, transcendentals=0, bytes_accessed=bytes_accessed),
    )(x_t, *consts)

    return out_t.T                           # back to (B, d_in)


# -----------------------------------------------------------------------------
# Pure-JAX reference (mirrors the PyTorch forward exactly, incl. concats)
# -----------------------------------------------------------------------------
def so_deforma_net_reference(t, x, alpha_ratio, params, skips):
    del alpha_ratio
    B = x.shape[0]
    t_rep = jnp.broadcast_to(t, (B, t.shape[-1]))
    feat = jnp.concatenate([x, t_rep], axis=-1)
    h = feat
    L = len(params)
    for l, (w, b) in enumerate(params):
        if l in skips:
            h = jnp.concatenate([h, feat], axis=-1)
        h = h @ w.T + b                      # nn.Linear: (out,in) weight
        if l != L - 1:
            h = jnp.maximum(h, 0.0)
    return x + h


# -----------------------------------------------------------------------------
# Parameter construction (deterministic, matches SODeformaNet.__init__ shapes)
# -----------------------------------------------------------------------------
def build_params(key, d_feature, d_in, d_hidden, n_blocks, n_layers, skips):
    D = n_layers * n_blocks * 2
    W = d_hidden
    input_ch = d_in + d_feature              # multires=0 => embedder out_dim == d_in
    params = []
    for l in range(D + 1):
        out_dim = 3 if l == D else W
        if l == 0:
            in_dim = input_ch
        elif l in skips:
            in_dim = input_ch + W
        else:
            in_dim = W
        key, kw, kb = jax.random.split(key, 3)
        w = jax.random.normal(kw, (out_dim, in_dim), jnp.float32) / math.sqrt(in_dim)
        b = jax.random.normal(kb, (out_dim,), jnp.float32) * 0.01
        params.append((w, b))
    return params, D


# -----------------------------------------------------------------------------
# Main
# -----------------------------------------------------------------------------
if __name__ == "__main__":
    key = jax.random.PRNGKey(0)

    # small, forward-consistent shapes
    d_feature = 16   # latent code dim (t)
    d_in = 3         # 3-D points
    d_hidden = 32
    n_blocks = 2
    n_layers = 2     # -> D = n_layers * n_blocks * 2 = 8 hidden layers + final
    skips = (4,)
    batch = 512

    key, kp, kx, kt = jax.random.split(key, 4)
    params, D = build_params(kp, d_feature, d_in, d_hidden, n_blocks, n_layers, skips)

    x = jax.random.normal(kx, (batch, d_in), jnp.float32)
    t = jax.random.normal(kt, (1, d_feature), jnp.float32)
    alpha_ratio = jnp.float32(1.0)  # unused at multires=0

    # f32 path (exact-ish): batch_tile=256 -> grid=(2,), both v7x TCs get a step
    out = jax.block_until_ready(
        so_deforma_net_forward(t, x, alpha_ratio, params, skips, batch_tile=256))
    ref = so_deforma_net_reference(t, x, alpha_ratio, params, skips)
    assert out.shape == (batch, d_in)
    assert jnp.allclose(out, ref, atol=1e-4, rtol=1e-4), "mismatch vs reference"

    # ragged batch: exercises Pallas' masked partial last block (no pad/slice copies)
    x_r = x[:300]
    out_r = jax.block_until_ready(
        so_deforma_net_forward(t, x_r, alpha_ratio, params, skips, batch_tile=256))
    ref_r = so_deforma_net_reference(t, x_r, alpha_ratio, params, skips)
    assert out_r.shape == (300, d_in)
    assert jnp.allclose(out_r, ref_r, atol=1e-4, rtol=1e-4), "ragged mismatch"

    # bf16 MXU operands (f32 accumulation/bias/ReLU/residual) — biggest win on v5e.
    # Looser tolerance: bf16 operand rounding is not bit-comparable to the f32 ref.
    out_bf16 = jax.block_until_ready(
        so_deforma_net_forward(t, x, alpha_ratio, params, skips,
                               batch_tile=256, use_bf16_matmul=True))
    assert jnp.allclose(out_bf16, ref, atol=1e-1, rtol=1e-1), "bf16 mismatch"

    print("KERNEL_OK")
</pallas_src>

<mosaic_0001>
module attributes {stable_mosaic.version = 11 : i64} {
  func.func @kernel(%arg0: i32, %arg1: memref<3x256xf32, #tpu.memory_space<vmem>>, %arg2: memref<2x32x3xf32, #tpu.memory_space<vmem>>, %arg3: memref<7x32x32xf32, #tpu.memory_space<vmem>>, %arg4: memref<32x8xf32, #tpu.memory_space<vmem>>, %arg5: memref<3x32xf32, #tpu.memory_space<vmem>>, %arg6: memref<3x1xf32, #tpu.memory_space<vmem>>, %arg7: memref<3x256xf32, #tpu.memory_space<vmem>>) attributes {dimension_semantics = [#tpu.dimension_semantics<parallel>], iteration_bounds = array<i64: 2>, scalar_prefetch = 0 : i64, scratch_operands = 0 : i64, tpu.core_type = #tpu.core_type<tc>, window_params = [{transform_indices = @transform_0, window_bounds = array<i64: 3, 256>}, {pipeline_mode = #tpu.pipeline_mode<synchronous>, transform_indices = @transform_1, window_bounds = array<i64: 2, 32, 3>}, {pipeline_mode = #tpu.pipeline_mode<synchronous>, transform_indices = @transform_2, window_bounds = array<i64: 7, 32, 32>}, {pipeline_mode = #tpu.pipeline_mode<synchronous>, transform_indices = @transform_3, window_bounds = array<i64: 32, 8>}, {pipeline_mode = #tpu.pipeline_mode<synchronous>, transform_indices = @transform_4, window_bounds = array<i64: 3, 32>}, {pipeline_mode = #tpu.pipeline_mode<synchronous>, transform_indices = @transform_5, window_bounds = array<i64: 3, 1>}, {transform_indices = @transform_6, window_bounds = array<i64: 3, 256>}]} {
    %c0 = arith.constant 0 : index
    %c0_0 = arith.constant 0 : index
    %0 = vector.load %arg1[%c0, %c0_0] : memref<3x256xf32, #tpu.memory_space<vmem>>, vector<3x256xf32>
    %c0_1 = arith.constant 0 : index
    %c0_2 = arith.constant 0 : index
    %c0_3 = arith.constant 0 : index
    %1 = vector.load %arg2[%c0_1, %c0_2, %c0_3] : memref<2x32x3xf32, #tpu.memory_space<vmem>>, vector<1x32x3xf32>
    %2 = vector.shape_cast %1 : vector<1x32x3xf32> to vector<32x3xf32>
    %3 = vector.extract_strided_slice %2 {offsets = [0, 0], sizes = [32, 1], strides = [1, 1]} : vector<32x3xf32> to vector<32x1xf32>
    %4 = vector.extract_strided_slice %0 {offsets = [0, 0], sizes = [1, 256], strides = [1, 1]} : vector<3x256xf32> to vector<1x256xf32>
    %5 = vector.broadcast %3 : vector<32x1xf32> to vector<32x256xf32>
    %6 = vector.broadcast %4 : vector<1x256xf32> to vector<32x256xf32>
    %7 = arith.mulf %5, %6 : vector<32x256xf32>
    %8 = vector.extract_strided_slice %2 {offsets = [0, 1], sizes = [32, 1], strides = [1, 1]} : vector<32x3xf32> to vector<32x1xf32>
    %9 = vector.extract_strided_slice %0 {offsets = [1, 0], sizes = [1, 256], strides = [1, 1]} : vector<3x256xf32> to vector<1x256xf32>
    %10 = vector.broadcast %8 : vector<32x1xf32> to vector<32x256xf32>
    %11 = vector.broadcast %9 : vector<1x256xf32> to vector<32x256xf32>
    %12 = arith.mulf %10, %11 : vector<32x256xf32>
    %13 = arith.addf %7, %12 : vector<32x256xf32>
    %14 = vector.extract_strided_slice %2 {offsets = [0, 2], sizes = [32, 1], strides = [1, 1]} : vector<32x3xf32> to vector<32x1xf32>
    %15 = vector.extract_strided_slice %0 {offsets = [2, 0], sizes = [1, 256], strides = [1, 1]} : vector<3x256xf32> to vector<1x256xf32>
    %16 = vector.broadcast %14 : vector<32x1xf32> to vector<32x256xf32>
    %17 = vector.broadcast %15 : vector<1x256xf32> to vector<32x256xf32>
    %18 = arith.mulf %16, %17 : vector<32x256xf32>
    %19 = arith.addf %13, %18 : vector<32x256xf32>
    %c0_4 = arith.constant 0 : index
    %c0_5 = arith.constant 0 : index
    %20 = vector.load %arg4[%c0_4, %c0_5] : memref<32x8xf32, #tpu.memory_space<vmem>>, vector<32x1xf32>
    %21 = vector.broadcast %20 : vector<32x1xf32> to vector<32x256xf32>
    %22 = arith.addf %19, %21 : vector<32x256xf32>
    %cst = arith.constant 0.000000e+00 : f32
    %23 = vector.broadcast %cst : f32 to vector<32x256xf32>
    %24 = arith.maximumf %22, %23 : vector<32x256xf32>
    %c0_6 = arith.constant 0 : index
    %c0_7 = arith.constant 0 : index
    %c0_8 = arith.constant 0 : index
    %25 = vector.load %arg3[%c0_6, %c0_7, %c0_8] : memref<7x32x32xf32, #tpu.memory_space<vmem>>, vector<1x32x32xf32>
    %26 = vector.shape_cast %25 : vector<1x32x32xf32> to vector<32x32xf32>
    %cst_9 = arith.constant dense<0.000000e+00> : vector<32x256xf32>
    %27 = tpu.matmul %26, %24, %cst_9 {dimension_numbers = #tpu.dot_dimension_numbers<[1], [0], [0], [1], [0, 0, 1, 1], [], []>} : vector<32x32xf32>, vector<32x256xf32>, vector<32x256xf32> -> vector<32x256xf32>
    %c0_10 = arith.constant 0 : index
    %c1 = arith.constant 1 : index
    %28 = vector.load %arg4[%c0_10, %c1] : memref<32x8xf32, #tpu.memory_space<vmem>>, vector<32x1xf32>
    %29 = vector.broadcast %28 : vector<32x1xf32> to vector<32x256xf32>
    %30 = arith.addf %27, %29 : vector<32x256xf32>
    %cst_11 = arith.constant 0.000000e+00 : f32
    %31 = vector.broadcast %cst_11 : f32 to vector<32x256xf32>
    %32 = arith.maximumf %30, %31 : vector<32x256xf32>
    %c1_12 = arith.constant 1 : index
    %c0_13 = arith.constant 0 : index
    %c0_14 = arith.constant 0 : index
    %33 = vector.load %arg3[%c1_12, %c0_13, %c0_14] : memref<7x32x32xf32, #tpu.memory_space<vmem>>, vector<1x32x32xf32>
    %34 = vector.shape_cast %33 : vector<1x32x32xf32> to vector<32x32xf32>
    %cst_15 = arith.constant dense<0.000000e+00> : vector<32x256xf32>
    %35 = tpu.matmul %34, %32, %cst_15 {dimension_numbers = #tpu.dot_dimension_numbers<[1], [0], [0], [1], [0, 0, 1, 1], [], []>} : vector<32x32xf32>, vector<32x256xf32>, vector<32x256xf32> -> vector<32x256xf32>
    %c0_16 = arith.constant 0 : index
    %c2 = arith.constant 2 : index
    %36 = vector.load %arg4[%c0_16, %c2] : memref<32x8xf32, #tpu.memory_space<vmem>>, vector<32x1xf32>
    %37 = vector.broadcast %36 : vector<32x1xf32> to vector<32x256xf32>
    %38 = arith.addf %35, %37 : vector<32x256xf32>
    %cst_17 = arith.constant 0.000000e+00 : f32
    %39 = vector.broadcast %cst_17 : f32 to vector<32x256xf32>
    %40 = arith.maximumf %38, %39 : vector<32x256xf32>
    %c2_18 = arith.constant 2 : index
    %c0_19 = arith.constant 0 : index
    %c0_20 = arith.constant 0 : index
    %41 = vector.load %arg3[%c2_18, %c0_19, %c0_20] : memref<7x32x32xf32, #tpu.memory_space<vmem>>, vector<1x32x32xf32>
    %42 = vector.shape_cast %41 : vector<1x32x32xf32> to vector<32x32xf32>
    %cst_21 = arith.constant dense<0.000000e+00> : vector<32x256xf32>
    %43 = tpu.matmul %42, %40, %cst_21 {dimension_numbers = #tpu.dot_dimension_numbers<[1], [0], [0], [1], [0, 0, 1, 1], [], []>} : vector<32x32xf32>, vector<32x256xf32>, vector<32x256xf32> -> vector<32x256xf32>
    %c0_22 = arith.constant 0 : index
    %c3 = arith.constant 3 : index
    %44 = vector.load %arg4[%c0_22, %c3] : memref<32x8xf32, #tpu.memory_space<vmem>>, vector<32x1xf32>
    %45 = vector.broadcast %44 : vector<32x1xf32> to vector<32x256xf32>
    %46 = arith.addf %43, %45 : vector<32x256xf32>
    %cst_23 = arith.constant 0.000000e+00 : f32
    %47 = vector.broadcast %cst_23 : f32 to vector<32x256xf32>
    %48 = arith.maximumf %46, %47 : vector<32x256xf32>
    %c3_24 = arith.constant 3 : index
    %c0_25 = arith.constant 0 : index
    %c0_26 = arith.constant 0 : index
    %49 = vector.load %arg3[%c3_24, %c0_25, %c0_26] : memref<7x32x32xf32, #tpu.memory_space<vmem>>, vector<1x32x32xf32>
    %50 = vector.shape_cast %49 : vector<1x32x32xf32> to vector<32x32xf32>
    %cst_27 = arith.constant dense<0.000000e+00> : vector<32x256xf32>
    %51 = tpu.matmul %50, %48, %cst_27 {dimension_numbers = #tpu.dot_dimension_numbers<[1], [0], [0], [1], [0, 0, 1, 1], [], []>} : vector<32x32xf32>, vector<32x256xf32>, vector<32x256xf32> -> vector<32x256xf32>
    %c1_28 = arith.constant 1 : index
    %c0_29 = arith.constant 0 : index
    %c0_30 = arith.constant 0 : index
    %52 = vector.load %arg2[%c1_28, %c0_29, %c0_30] : memref<2x32x3xf32, #tpu.memory_space<vmem>>, vector<1x32x3xf32>
    %53 = vector.shape_cast %52 : vector<1x32x3xf32> to vector<32x3xf32>
    %54 = vector.extract_strided_slice %53 {offsets = [0, 0], sizes = [32, 1], strides = [1, 1]} : vector<32x3xf32> to vector<32x1xf32>
    %55 = vector.extract_strided_slice %0 {offsets = [0, 0], sizes = [1, 256], strides = [1, 1]} : vector<3x256xf32> to vector<1x256xf32>
    %56 = vector.broadcast %54 : vector<32x1xf32> to vector<32x256xf32>
    %57 = vector.broadcast %55 : vector<1x256xf32> to vector<32x256xf32>
    %58 = arith.mulf %56, %57 : vector<32x256xf32>
    %59 = vector.extract_strided_slice %53 {offsets = [0, 1], sizes = [32, 1], strides = [1, 1]} : vector<32x3xf32> to vector<32x1xf32>
    %60 = vector.extract_strided_slice %0 {offsets = [1, 0], sizes = [1, 256], strides = [1, 1]} : vector<3x256xf32> to vector<1x256xf32>
    %61 = vector.broadcast %59 : vector<32x1xf32> to vector<32x256xf32>
    %62 = vector.broadcast %60 : vector<1x256xf32> to vector<32x256xf32>
    %63 = arith.mulf %61, %62 : vector<32x256xf32>
    %64 = arith.addf %58, %63 : vector<32x256xf32>
    %65 = vector.extract_strided_slice %53 {offsets = [0, 2], sizes = [32, 1], strides = [1, 1]} : vector<32x3xf32> to vector<32x1xf32>
    %66 = vector.extract_strided_slice %0 {offsets = [2, 0], sizes = [1, 256], strides = [1, 1]} : vector<3x256xf32> to vector<1x256xf32>
    %67 = vector.broadcast %65 : vector<32x1xf32> to vector<32x256xf32>
    %68 = vector.broadcast %66 : vector<1x256xf32> to vector<32x256xf32>
    %69 = arith.mulf %67, %68 : vector<32x256xf32>
    %70 = arith.addf %64, %69 : vector<32x256xf32>
    %71 = arith.addf %51, %70 : vector<32x256xf32>
    %c0_31 = arith.constant 0 : index
    %c4 = arith.constant 4 : index
    %72 = vector.load %arg4[%c0_31, %c4] : memref<32x8xf32, #tpu.memory_space<vmem>>, vector<32x1xf32>
    %73 = vector.broadcast %72 : vector<32x1xf32> to vector<32x256xf32>
    %74 = arith.addf %71, %73 : vector<32x256xf32>
    %cst_32 = arith.constant 0.000000e+00 : f32
    %75 = vector.broadcast %cst_32 : f32 to vector<32x256xf32>
    %76 = arith.maximumf %74, %75 : vector<32x256xf32>
    %c4_33 = arith.constant 4 : index
    %c0_34 = arith.constant 0 : index
    %c0_35 = arith.constant 0 : index
    %77 = vector.load %arg3[%c4_33, %c0_34, %c0_35] : memref<7x32x32xf32, #tpu.memory_space<vmem>>, vector<1x32x32xf32>
    %78 = vector.shape_cast %77 : vector<1x32x32xf32> to vector<32x32xf32>
    %cst_36 = arith.constant dense<0.000000e+00> : vector<32x256xf32>
    %79 = tpu.matmul %78, %76, %cst_36 {dimension_numbers = #tpu.dot_dimension_numbers<[1], [0], [0], [1], [0, 0, 1, 1], [], []>} : vector<32x32xf32>, vector<32x256xf32>, vector<32x256xf32> -> vector<32x256xf32>
    %c0_37 = arith.constant 0 : index
    %c5 = arith.constant 5 : index
    %80 = vector.load %arg4[%c0_37, %c5] : memref<32x8xf32, #tpu.memory_space<vmem>>, vector<32x1xf32>
    %81 = vector.broadcast %80 : vector<32x1xf32> to vector<32x256xf32>
    %82 = arith.addf %79, %81 : vector<32x256xf32>
    %cst_38 = arith.constant 0.000000e+00 : f32
    %83 = vector.broadcast %cst_38 : f32 to vector<32x256xf32>
    %84 = arith.maximumf %82, %83 : vector<32x256xf32>
    %c5_39 = arith.constant 5 : index
    %c0_40 = arith.constant 0 : index
    %c0_41 = arith.constant 0 : index
    %85 = vector.load %arg3[%c5_39, %c0_40, %c0_41] : memref<7x32x32xf32, #tpu.memory_space<vmem>>, vector<1x32x32xf32>
    %86 = vector.shape_cast %85 : vector<1x32x32xf32> to vector<32x32xf32>
    %cst_42 = arith.constant dense<0.000000e+00> : vector<32x256xf32>
    %87 = tpu.matmul %86, %84, %cst_42 {dimension_numbers = #tpu.dot_dimension_numbers<[1], [0], [0], [1], [0, 0, 1, 1], [], []>} : vector<32x32xf32>, vector<32x256xf32>, vector<32x256xf32> -> vector<32x256xf32>
    %c0_43 = arith.constant 0 : index
    %c6 = arith.constant 6 : index
    %88 = vector.load %arg4[%c0_43, %c6] : memref<32x8xf32, #tpu.memory_space<vmem>>, vector<32x1xf32>
    %89 = vector.broadcast %88 : vector<32x1xf32> to vector<32x256xf32>
    %90 = arith.addf %87, %89 : vector<32x256xf32>
    %cst_44 = arith.constant 0.000000e+00 : f32
    %91 = vector.broadcast %cst_44 : f32 to vector<32x256xf32>
    %92 = arith.maximumf %90, %91 : vector<32x256xf32>
    %c6_45 = arith.constant 6 : index
    %c0_46 = arith.constant 0 : index
    %c0_47 = arith.constant 0 : index
    %93 = vector.load %arg3[%c6_45, %c0_46, %c0_47] : memref<7x32x32xf32, #tpu.memory_space<vmem>>, vector<1x32x32xf32>
    %94 = vector.shape_cast %93 : vector<1x32x32xf32> to vector<32x32xf32>
    %cst_48 = arith.constant dense<0.000000e+00> : vector<32x256xf32>
    %95 = tpu.matmul %94, %92, %cst_48 {dimension_numbers = #tpu.dot_dimension_numbers<[1], [0], [0], [1], [0, 0, 1, 1], [], []>} : vector<32x32xf32>, vector<32x256xf32>, vector<32x256xf32> -> vector<32x256xf32>
    %c0_49 = arith.constant 0 : index
    %c7 = arith.constant 7 : index
    %96 = vector.load %arg4[%c0_49, %c7] : memref<32x8xf32, #tpu.memory_space<vmem>>, vector<32x1xf32>
    %97 = vector.broadcast %96 : vector<32x1xf32> to vector<32x256xf32>
    %98 = arith.addf %95, %97 : vector<32x256xf32>
    %cst_50 = arith.constant 0.000000e+00 : f32
    %99 = vector.broadcast %cst_50 : f32 to vector<32x256xf32>
    %100 = arith.maximumf %98, %99 : vector<32x256xf32>
    %c0_51 = arith.constant 0 : index
    %c0_52 = arith.constant 0 : index
    %101 = vector.load %arg5[%c0_51, %c0_52] : memref<3x32xf32, #tpu.memory_space<vmem>>, vector<3x32xf32>
    %cst_53 = arith.constant dense<0.000000e+00> : vector<3x256xf32>
    %102 = tpu.matmul %101, %100, %cst_53 {dimension_numbers = #tpu.dot_dimension_numbers<[1], [0], [0], [1], [0, 0, 1, 1], [], []>} : vector<3x32xf32>, vector<32x256xf32>, vector<3x256xf32> -> vector<3x256xf32>
    %c0_54 = arith.constant 0 : index
    %c0_55 = arith.constant 0 : index
    %103 = vector.load %arg6[%c0_54, %c0_55] : memref<3x1xf32, #tpu.memory_space<vmem>>, vector<3x1xf32>
    %104 = vector.broadcast %103 : vector<3x1xf32> to vector<3x256xf32>
    %105 = arith.addf %102, %104 : vector<3x256xf32>
    %106 = arith.addf %0, %105 : vector<3x256xf32>
    %c0_56 = arith.constant 0 : index
    %c0_57 = arith.constant 0 : index
    %107 = vector.load %arg7[%c0_56, %c0_57] : memref<3x256xf32, #tpu.memory_space<vmem>>, vector<3x256xf32>
    tpu.vector_store %arg7[%c0_56, %c0_57], %106 {strides = array<i32>} : memref<3x256xf32, #tpu.memory_space<vmem>>, vector<3x256xf32>,
    return
  }
  func.func @transform_0(%arg0: i32) -> (i32, i32) {
    %c0_i32 = arith.constant 0 : i32
    %c0_i32_0 = arith.constant 0 : i32
    return %c0_i32, %arg0 : i32, i32
  }
  func.func @transform_1(%arg0: i32) -> (i32, i32, i32) {
    %c0_i32 = arith.constant 0 : i32
    %c0_i32_0 = arith.constant 0 : i32
    %c0_i32_1 = arith.constant 0 : i32
    %c0_i32_2 = arith.constant 0 : i32
    return %c0_i32, %c0_i32_0, %c0_i32_1 : i32, i32, i32
  }
  func.func @transform_2(%arg0: i32) -> (i32, i32, i32) {
    %c0_i32 = arith.constant 0 : i32
    %c0_i32_0 = arith.constant 0 : i32
    %c0_i32_1 = arith.constant 0 : i32
    %c0_i32_2 = arith.constant 0 : i32
    return %c0_i32, %c0_i32_0, %c0_i32_1 : i32, i32, i32
  }
  func.func @transform_3(%arg0: i32) -> (i32, i32) {
    %c0_i32 = arith.constant 0 : i32
    %c0_i32_0 = arith.constant 0 : i32
    %c0_i32_1 = arith.constant 0 : i32
    return %c0_i32, %c0_i32_0 : i32, i32
  }
  func.func @transform_4(%arg0: i32) -> (i32, i32) {
    %c0_i32 = arith.constant 0 : i32
    %c0_i32_0 = arith.constant 0 : i32
    %c0_i32_1 = arith.constant 0 : i32
    return %c0_i32, %c0_i32_0 : i32, i32
  }
  func.func @transform_5(%arg0: i32) -> (i32, i32) {
    %c0_i32 = arith.constant 0 : i32
    %c0_i32_0 = arith.constant 0 : i32
    %c0_i32_1 = arith.constant 0 : i32
    return %c0_i32, %c0_i32_0 : i32, i32
  }
  func.func @transform_6(%arg0: i32) -> (i32, i32) {
    %c0_i32 = arith.constant 0 : i32
    %c0_i32_0 = arith.constant 0 : i32
    return %c0_i32, %arg0 : i32, i32
  }
}

</mosaic_0001>

<llo_original>
// kernel: tpu_custom_call.1
$region0: #{tpu_custom_call.1}
  #allocation0 [shape = 'u32[]', space=smem, size = 0x4, offset = 0x4, fixed_abs, tag = 'smem constant byte address 0x4 - core index']
  #allocation1 [shape = 'u32[72,128]{1,0:T(1,128)}', space=vmem, size = 0x9000, scoped, tag = 'internal scratch']
  %s0 = inlined_call_operand.vmem [shape: f32[3,512], index: 0, kind: input, shape index: {}]
  %s1 = inlined_call_operand.vmem [shape: f32[2,32,3], index: 1, kind: input, shape index: {}]
  %s2 = inlined_call_operand.hbm [shape: f32[7,32,32], index: 2, kind: input, shape index: {}]
  %s3 = inlined_call_operand.vmem [shape: f32[32,8], index: 3, kind: input, shape index: {}]
  %s4 = inlined_call_operand.vmem [shape: f32[3,32], index: 4, kind: input, shape index: {}]
  %s5 = inlined_call_operand.vmem [shape: f32[3,1], index: 5, kind: input, shape index: {}]
  %s6 = inlined_call_operand.hbm [shape: f32[3,512], index: 6, kind: output, shape index: {}]
  %s7 = sld [smem:[#allocation0]]
  $region61: #{tpu_custom_call.1} parent=0
    _
  %s9 = ssub.s32 1, %s7
  %s10 = scalar_select 0, %s9, %s7
  $region1: #{tpu_custom_call.1} parent=0
    #allocation2 [shape = 'u8[114688]{0}', space=vmem, size = 0x1c000, scoped, tag = 'input window, operand 2, single buffered']
    #allocation3 [shape = 's32[2]{0}', space=sflag, size = 0x8, scoped, tag = 'scoped memory for tpu_custom_call.1']
    #allocation4 [shape = 's32[2]{0}', space=sflag, size = 0x8, scoped, tag = 'scoped memory for tpu_custom_call.1']
    #allocation5 [shape = 'u8[8192]{0}', space=vmem, size = 0x2000, scoped, tag = 'output window, operand 0']
    %11 = vsyncpa [#allocation3], 0
    %12 = vsyncpa [#allocation4], 0
    %s13 = scalar_lea.sflag [#allocation4], 1
    %14 = vsyncpa %s13, 0
    loop: start=0, step=1, limit=4
    $region2: #{tpu_custom_call.1} parent=1 // loop_pre_header
      _
    $region3: #{tpu_custom_call.1} parent=1 // loop_header
      %s16 = sphi 0, %s20
      %p17 = scmp.ge.s32.totalorder %s16, 4
      %s26 = sphi 0, %s28
      %s29 = sphi 0, %s26
      %s30 = sphi 0, %s29
      %s46 = sphi 0, %s30
      %s50 = sphi 0, %s50
      %s52 = sphi 0, %s50
      %s53 = sphi 0, %s52
      %s67 = sphi 0, %s53
      %s71 = sphi 0, %s71
      %s73 = sphi 0, %s71
      %s74 = sphi 0, %s73
      %s88 = sphi 0, %s74
      %s92 = sphi 0, %s92
      %s94 = sphi 0, %s92
      %s95 = sphi 0, %s94
      %s109 = sphi 0, %s95
      %s113 = sphi 0, %s113
      %s115 = sphi 0, %s113
      %s116 = sphi 0, %s115
      %s130 = sphi 0, %s116
      %s134 = sphi 0, %s134
      %s136 = sphi 0, %s134
      %s137 = sphi 0, %s136
      %s151 = sphi 0, %s137
      %s157 = sphi 0, %s159
      %s160 = sphi 0, %s157
      %s161 = sphi 0, %s160
      %s177 = sphi 0, %s161
    $region4: #{tpu_custom_call.1} parent=1 // loop_header_branch
      %19 = sbr.rel (%p17) target = $region8
    $region5: #{tpu_custom_call.1} parent=1 // loop_body
      %s21 = ssub.s32 %s16, 1
      %s22 = ssub.s32 %s16, 2
      %s23 = sadd.s32 %s16, 1
      %s24 = ssub.s32 %s16, %s23
      %p25 = scmp.eq.s32.totalorder %s24, 0
      %s27 = sadd.s32 %s26, 1
      %s28 = scalar_select %p25, %s26, %s27
      %p31 = pneg %p25
      %p32 = scmp.eq.s32.totalorder %s16, 1
      %p33 = por %p31, %p32
      %p34 = scmp.ne.s32.totalorder %s26, %s29
      %p35 = scmp.eq.s32.totalorder %s16, 0
      %p36 = por %p34, %p35
      %p37 = scmp.ne.s32.totalorder %s26, %s29
      %p38 = scmp.eq.s32.totalorder %s21, 1
      %p39 = por %p37, %p38
      %p40 = scmp.ne.s32.totalorder %s29, %s30
      %p41 = scmp.eq.s32.totalorder %s21, 0
      %p42 = por %p40, %p41
      %p43 = scmp.ne.s32.totalorder %s29, %s30
      %p44 = scmp.eq.s32.totalorder %s22, 1
      %p45 = por %p43, %p44
      %p47 = scmp.ne.s32.totalorder %s30, %s46
      %p48 = scmp.eq.s32.totalorder %s22, 0
      %p49 = por %p47, %p48
      %s51 = sadd.s32 %s50, 1
      %p54 = scmp.eq.s32.totalorder %s16, 1
      %p55 = scmp.ne.s32.totalorder %s50, %s52
      %p56 = scmp.eq.s32.totalorder %s16, 0
      %p57 = por %p55, %p56
      %p58 = scmp.ne.s32.totalorder %s50, %s52
      %p59 = scmp.eq.s32.totalorder %s21, 1
      %p60 = por %p58, %p59
      %p61 = scmp.ne.s32.totalorder %s52, %s53
      %p62 = scmp.eq.s32.totalorder %s21, 0
      %p63 = por %p61, %p62
      %p64 = scmp.ne.s32.totalorder %s52, %s53
      %p65 = scmp.eq.s32.totalorder %s22, 1
      %p66 = por %p64, %p65
      %p68 = scmp.ne.s32.totalorder %s53, %s67
      %p69 = scmp.eq.s32.totalorder %s22, 0
      %p70 = por %p68, %p69
      %s72 = sadd.s32 %s71, 1
      %p75 = scmp.eq.s32.totalorder %s16, 1
      %p76 = scmp.ne.s32.totalorder %s71, %s73
      %p77 = scmp.eq.s32.totalorder %s16, 0
      %p78 = por %p76, %p77
      %p79 = scmp.ne.s32.totalorder %s71, %s73
      %p80 = scmp.eq.s32.totalorder %s21, 1
      %p81 = por %p79, %p80
      %p82 = scmp.ne.s32.totalorder %s73, %s74
      %p83 = scmp.eq.s32.totalorder %s21, 0
      %p84 = por %p82, %p83
      %p85 = scmp.ne.s32.totalorder %s73, %s74
      %p86 = scmp.eq.s32.totalorder %s22, 1
      %p87 = por %p85, %p86
      %p89 = scmp.ne.s32.totalorder %s74, %s88
      %p90 = scmp.eq.s32.totalorder %s22, 0
      %p91 = por %p89, %p90
      %s93 = sadd.s32 %s92, 1
      %p96 = scmp.eq.s32.totalorder %s16, 1
      %p97 = scmp.ne.s32.totalorder %s92, %s94
      %p98 = scmp.eq.s32.totalorder %s16, 0
      %p99 = por %p97, %p98
      %p100 = scmp.ne.s32.totalorder %s92, %s94
      %p101 = scmp.eq.s32.totalorder %s21, 1
      %p102 = por %p100, %p101
      %p103 = scmp.ne.s32.totalorder %s94, %s95
      %p104 = scmp.eq.s32.totalorder %s21, 0
      %p105 = por %p103, %p104
      %p106 = scmp.ne.s32.totalorder %s94, %s95
      %p107 = scmp.eq.s32.totalorder %s22, 1
      %p108 = por %p106, %p107
      %p110 = scmp.ne.s32.totalorder %s95, %s109
      %p111 = scmp.eq.s32.totalorder %s22, 0
      %p112 = por %p110, %p111
      %s114 = sadd.s32 %s113, 1
      %p117 = scmp.eq.s32.totalorder %s16, 1
      %p118 = scmp.ne.s32.totalorder %s113, %s115
      %p119 = scmp.eq.s32.totalorder %s16, 0
      %p120 = por %p118, %p119
      %p121 = scmp.ne.s32.totalorder %s113, %s115
      %p122 = scmp.eq.s32.totalorder %s21, 1
      %p123 = por %p121, %p122
      %p124 = scmp.ne.s32.totalorder %s115, %s116
      %p125 = scmp.eq.s32.totalorder %s21, 0
      %p126 = por %p124, %p125
      %p127 = scmp.ne.s32.totalorder %s115, %s116
      %p128 = scmp.eq.s32.totalorder %s22, 1
      %p129 = por %p127, %p128
      %p131 = scmp.ne.s32.totalorder %s116, %s130
      %p132 = scmp.eq.s32.totalorder %s22, 0
      %p133 = por %p131, %p132
      %s135 = sadd.s32 %s134, 1
      %p138 = scmp.eq.s32.totalorder %s16, 1
      %p139 = scmp.ne.s32.totalorder %s134, %s136
      %p140 = scmp.eq.s32.totalorder %s16, 0
      %p141 = por %p139, %p140
      %p142 = scmp.ne.s32.totalorder %s134, %s136
      %p143 = scmp.eq.s32.totalorder %s21, 1
      %p144 = por %p142, %p143
      %p145 = scmp.ne.s32.totalorder %s136, %s137
      %p146 = scmp.eq.s32.totalorder %s21, 0
      %p147 = por %p145, %p146
      %p148 = scmp.ne.s32.totalorder %s136, %s137
      %p149 = scmp.eq.s32.totalorder %s22, 1
      %p150 = por %p148, %p149
      %p152 = scmp.ne.s32.totalorder %s137, %s151
      %p153 = scmp.eq.s32.totalorder %s22, 0
      %p154 = por %p152, %p153
      %s155 = ssub.s32 %s16, %s23
      %p156 = scmp.eq.s32.totalorder %s155, 0
      %s158 = sadd.s32 %s157, 1
      %s159 = scalar_select %p156, %s157, %s158
      %p162 = pneg %p156
      %p163 = scmp.eq.s32.totalorder %s16, 1
      %p164 = por %p162, %p163
      %p165 = scmp.ne.s32.totalorder %s157, %s160
      %p166 = scmp.eq.s32.totalorder %s16, 0
      %p167 = por %p165, %p166
      %p168 = scmp.ne.s32.totalorder %s157, %s160
      %p169 = scmp.eq.s32.totalorder %s21, 1
      %p170 = por %p168, %p169
      %p171 = scmp.ne.s32.totalorder %s160, %s161
      %p172 = scmp.eq.s32.totalorder %s21, 0
      %p173 = por %p171, %p172
      %p174 = scmp.ne.s32.totalorder %s160, %s161
      %p175 = scmp.eq.s32.totalorder %s22, 1
      %p176 = por %p174, %p175
      %p178 = scmp.ne.s32.totalorder %s161, %s177
      %p179 = scmp.eq.s32.totalorder %s22, 0
      %p180 = por %p178, %p179
      %p181 = scmp.le.s32.totalorder 1, %s16
      %p182 = scmp.lt.s32.totalorder %s16, 3
      %p183 = pnand %p181, %p182
      %p184 = pneg %p183
      // Predicated region
      $region9: #{tpu_custom_call.1} parent=5 // pred_check
        _
      $region10: #{tpu_custom_call.1} parent=5 // pred_check_branch
        %186 = sbr.rel (%p183) target = $region12
      $region11: #{tpu_custom_call.1} parent=5 // pred_region
        %s187 = ssub.s32 %s16, 1
        // Predicated region
        $region13: #{tpu_custom_call.1} parent=11 // pred_check
          %p188 = pneg %p63
        $region14: #{tpu_custom_call.1} parent=11 // pred_check_branch
          %190 = sbr.rel (%p188) target = $region16
        $region15: #{tpu_custom_call.1} parent=11 // pred_region
          _
        $region16: #{tpu_custom_call.1} parent=11 // pred_fallthru
          _
        // Predicated region
        $region17: #{tpu_custom_call.1} parent=11 // pred_check
          %p191 = pneg %p84
        $region18: #{tpu_custom_call.1} parent=11 // pred_check_branch
          %193 = sbr.rel (%p191) target = $region20
        $region19: #{tpu_custom_call.1} parent=11 // pred_region
          %195 = vsyncadd [#allocation3], 0
          %s196 = sshll.u32 %s2, 4
          %s197 = int_to_ptr.hbm [resolvable:$true] %s196
          %s198 = sshll.u32 [#allocation2], 4
          %s199 = int_to_ptr.vmem [resolvable:$true] %s198
          %204 = dma.hbm_to_vmem [thread:$0]  %s197, 3584, %s199, [#allocation3], 128, 128, 8
        $region20: #{tpu_custom_call.1} parent=11 // pred_fallthru
          _
        // Predicated region
        $region21: #{tpu_custom_call.1} parent=11 // pred_check
          %p205 = pneg %p105
        $region22: #{tpu_custom_call.1} parent=11 // pred_check_branch
          %207 = sbr.rel (%p205) target = $region24
        $region23: #{tpu_custom_call.1} parent=11 // pred_region
          _
        $region24: #{tpu_custom_call.1} parent=11 // pred_fallthru
          _
        // Predicated region
        $region25: #{tpu_custom_call.1} parent=11 // pred_check
          %p208 = pneg %p126
        $region26: #{tpu_custom_call.1} parent=11 // pred_check_branch
          %210 = sbr.rel (%p208) target = $region28
        $region27: #{tpu_custom_call.1} parent=11 // pred_region
          _
        $region28: #{tpu_custom_call.1} parent=11 // pred_fallthru
          _
        // Predicated region
        $region29: #{tpu_custom_call.1} parent=11 // pred_check
          %p211 = pneg %p147
        $region30: #{tpu_custom_call.1} parent=11 // pred_check_branch
          %213 = sbr.rel (%p211) target = $region32
        $region31: #{tpu_custom_call.1} parent=11 // pred_region
          _
        $region32: #{tpu_custom_call.1} parent=11 // pred_fallthru
          _
      $region12: #{tpu_custom_call.1} parent=5 // pred_fallthru
        _
      %p214 = scmp.lt.s32.totalorder %s16, 2
      // Predicated region
      $region33: #{tpu_custom_call.1} parent=5 // pred_check
        %p215 = pneg %p214
      $region34: #{tpu_custom_call.1} parent=5 // pred_check_branch
        %217 = sbr.rel (%p215) target = $region36
      $region35: #{tpu_custom_call.1} parent=5 // pred_region
        // Predicated region
        $region37: #{tpu_custom_call.1} parent=35 // pred_check
          %p218 = pneg %p36
        $region38: #{tpu_custom_call.1} parent=35 // pred_check_branch
          %220 = sbr.rel (%p218) target = $region40
        $region39: #{tpu_custom_call.1} parent=35 // pred_region
          %s221 = smul.u32 2, %s16
          %p222 = scmp.lt.s32.totalorder %s221, 3
          %s223 = scalar_select %p222, %s221, 3
          %s224 = smul.addr %s223, 4
          %s225 = scalar_lea.vmem %s0, %s224
          %s226 = smul.u32 2, %s16
        $region40: #{tpu_custom_call.1} parent=35 // pred_fallthru
          _
      $region36: #{tpu_custom_call.1} parent=5 // pred_fallthru
        _
      %p227 = scmp.le.s32.totalorder 1, %s16
      %p228 = scmp.lt.s32.totalorder %s16, 3
      %p229 = pnand %p227, %p228
      %p230 = pneg %p229
      // Predicated region
      $region41: #{tpu_custom_call.1} parent=5 // pred_check
        _
      $region42: #{tpu_custom_call.1} parent=5 // pred_check_branch
        %232 = sbr.rel (%p229) target = $region44
      $region43: #{tpu_custom_call.1} parent=5 // pred_region
        %s233 = ssub.s32 %s16, 1
        // Predicated region
        $region45: #{tpu_custom_call.1} parent=43 // pred_check
          %p234 = pneg %p84
        $region46: #{tpu_custom_call.1} parent=43 // pred_check_branch
          %236 = sbr.rel (%p234) target = $region48
        $region47: #{tpu_custom_call.1} parent=43 // pred_region
          %238 = dma.done [#allocation3], 3584
        $region48: #{tpu_custom_call.1} parent=43 // pred_fallthru
          _
        %s239 = smul.u32 2, %s21
        %p240 = scmp.lt.s32.totalorder %s239, 3
        %s241 = scalar_select %p240, %s239, 3
        %s242 = smul.addr %s241, 4
        %s243 = scalar_lea.vmem %s0, %s242
        %p244 = pneg %p42
        %p245 = pneg %p39
        %p246 = pneg %p63
        %p247 = pneg %p60
        %p248 = pneg %p84
        %p249 = pneg %p81
        %p250 = pneg %p105
        %p251 = pneg %p102
        %p252 = pneg %p126
        %p253 = pneg %p123
        %p254 = pneg %p147
        %p255 = pneg %p144
        %p256 = pneg %p173
        %p257 = pneg %p170
        %s258 = sand.u32 %s160, 1
        %s259 = scalar_lea.sflag [#allocation4], %s258
        %s260 = sand.u32 %s160, 1
        %s261 = smul.addr %s260, 8
        %s262 = scalar_lea.vmem [#allocation5], %s261
        %s263 = smul.u32 2, %s21
        %p264 = scmp.lt.s32.totalorder %s263, 3
        %s265 = scalar_select %p264, %s263, 3
        %s266 = smul.addr %s265, 4
        %s267 = scalar_lea.vmem %s0, %s266
        %s268 = smul.u32 2, %s21
        %s269 = smul.u32 2, %s21
        %v270 = vld [vmem:[%s267] sm:$0x77]
        %v271 = vld [vmem:[%s1] sm:$0xff]
        %v272 = vld [vmem:[%s1 + $0x8] sm:$0xff]
        %v273 = vld [vmem:[%s1 + $0x10] sm:$0xff]
        %v274 = vld [vmem:[%s1 + $0x18] sm:$0xff]
        %276 = vset.pattern.permute.xlu0 0
        %277 = vperm.xlu0 %276, %v271
        %v278 = vpop.permute.xlu0 %277
        %281 = vset.pattern.permute.xlu0 0
        %282 = vperm.xlu0 %281, %v272
        %v283 = vpop.permute.xlu0 %282
        %286 = vset.pattern.permute.xlu0 0
        %287 = vperm.xlu0 %286, %v273
        %v288 = vpop.permute.xlu0 %287
        %291 = vset.pattern.permute.xlu0 0
        %292 = vperm.xlu0 %291, %v274
        %v293 = vpop.permute.xlu0 %292
        %v296 = vperm.slane %v270, 0
        %v297 = vperm.slane %v270, 4
        %v300 = vperm.slane %v296, 0
        %v301 = vperm.slane %v297, 0
        %v302 = vmul.f32 %v278, %v300
        %v303 = vmul.f32 %v278, %v301
        %v304 = vmul.f32 %v283, %v300
        %v305 = vmul.f32 %v283, %v301
        %v306 = vmul.f32 %v288, %v300
        %v307 = vmul.f32 %v288, %v301
        %v308 = vmul.f32 %v293, %v300
        %v309 = vmul.f32 %v293, %v301
        %310 = vset.pattern.permute.xlu0 1
        %311 = vperm.xlu0 %310, %v271
        %v312 = vpop.permute.xlu0 %311
        %314 = vset.pattern.permute.xlu0 1
        %315 = vperm.xlu0 %314, %v272
        %v316 = vpop.permute.xlu0 %315
        %318 = vset.pattern.permute.xlu0 1
        %319 = vperm.xlu0 %318, %v273
        %v320 = vpop.permute.xlu0 %319
        %322 = vset.pattern.permute.xlu0 1
        %323 = vperm.xlu0 %322, %v274
        %v324 = vpop.permute.xlu0 %323
        %v326 = vperm.slane %v270, 1
        %v327 = vperm.slane %v270, 5
        %v330 = vperm.slane %v326, 1
        %v331 = vperm.slane %v327, 1
        %v332 = vmul.f32 %v312, %v330
        %v333 = vmul.f32 %v312, %v331
        %v334 = vmul.f32 %v316, %v330
        %v335 = vmul.f32 %v316, %v331
        %v336 = vmul.f32 %v320, %v330
        %v337 = vmul.f32 %v320, %v331
        %v338 = vmul.f32 %v324, %v330
        %v339 = vmul.f32 %v324, %v331
        %v340 = vadd.f32 %v302, %v332
        %v341 = vadd.f32 %v303, %v333
        %v342 = vadd.f32 %v304, %v334
        %v343 = vadd.f32 %v305, %v335
        %v344 = vadd.f32 %v306, %v336
        %v345 = vadd.f32 %v307, %v337
        %v346 = vadd.f32 %v308, %v338
        %v347 = vadd.f32 %v309, %v339
        %348 = vset.pattern.permute.xlu0 2
        %349 = vperm.xlu0 %348, %v271
        %v350 = vpop.permute.xlu0 %349
        %352 = vset.pattern.permute.xlu0 2
        %353 = vperm.xlu0 %352, %v272
        %v354 = vpop.permute.xlu0 %353
        %356 = vset.pattern.permute.xlu0 2
        %357 = vperm.xlu0 %356, %v273
        %v358 = vpop.permute.xlu0 %357
        %360 = vset.pattern.permute.xlu0 2
        %361 = vperm.xlu0 %360, %v274
        %v362 = vpop.permute.xlu0 %361
        %v364 = vperm.slane %v270, 2
        %v365 = vperm.slane %v270, 6
        %v368 = vperm.slane %v364, 2
        %v369 = vperm.slane %v365, 2
        %v370 = vmul.f32 %v350, %v368
        %v371 = vmul.f32 %v350, %v369
        %v372 = vmul.f32 %v354, %v368
        %v373 = vmul.f32 %v354, %v369
        %v374 = vmul.f32 %v358, %v368
        %v375 = vmul.f32 %v358, %v369
        %v376 = vmul.f32 %v362, %v368
        %v377 = vmul.f32 %v362, %v369
        %v378 = vadd.f32 %v340, %v370
        %v379 = vadd.f32 %v341, %v371
        %v380 = vadd.f32 %v342, %v372
        %v381 = vadd.f32 %v343, %v373
        %v382 = vadd.f32 %v344, %v374
        %v383 = vadd.f32 %v345, %v375
        %v384 = vadd.f32 %v346, %v376
        %v385 = vadd.f32 %v347, %v377
        %v386 = vld [vmem:[%s3] sm:$0xff]
        %v387 = vld [vmem:[%s3 + $0x8] sm:$0xff]
        %v388 = vld [vmem:[%s3 + $0x10] sm:$0xff]
        %v389 = vld [vmem:[%s3 + $0x18] sm:$0xff]
        %391 = vset.pattern.permute.xlu0 0
        %392 = vperm.xlu0 %391, %v386
        %v393 = vpop.permute.xlu0 %392
        %396 = vset.pattern.permute.xlu0 0
        %397 = vperm.xlu0 %396, %v387
        %v398 = vpop.permute.xlu0 %397
        %401 = vset.pattern.permute.xlu0 0
        %402 = vperm.xlu0 %401, %v388
        %v403 = vpop.permute.xlu0 %402
        %406 = vset.pattern.permute.xlu0 0
        %407 = vperm.xlu0 %406, %v389
        %v408 = vpop.permute.xlu0 %407
        %v410 = vadd.f32 %v378, %v393
        %v411 = vadd.f32 %v379, %v393
        %v412 = vadd.f32 %v380, %v398
        %v413 = vadd.f32 %v381, %v398
        %v414 = vadd.f32 %v382, %v403
        %v415 = vadd.f32 %v383, %v403
        %v416 = vadd.f32 %v384, %v408
        %v417 = vadd.f32 %v385, %v408
        %v418 = vmax.f32 %v410, 0.0
        %v419 = vmax.f32 %v411, 0.0
        %v420 = vmax.f32 %v412, 0.0
        %v421 = vmax.f32 %v413, 0.0
        %v422 = vmax.f32 %v414, 0.0
        %v423 = vmax.f32 %v415, 0.0
        %v424 = vmax.f32 %v416, 0.0
        %v425 = vmax.f32 %v417, 0.0
        %v426 = vld [vmem:[#allocation2] sm:$0xff]
        %v427 = vld [vmem:[#allocation2 + $0x8] sm:$0xff]
        %v428 = vld [vmem:[#allocation2 + $0x10] sm:$0xff]
        %v429 = vld [vmem:[#allocation2 + $0x18] sm:$0xff]
        %430 = vset.pattern.permute.xlu0 1
        %431 = vperm.xlu0 %430, %v386
        %v432 = vpop.permute.xlu0 %431
        %434 = vset.pattern.permute.xlu0 1
        %435 = vperm.xlu0 %434, %v387
        %v436 = vpop.permute.xlu0 %435
        %438 = vset.pattern.permute.xlu0 1
        %439 = vperm.xlu0 %438, %v388
        %v440 = vpop.permute.xlu0 %439
        %442 = vset.pattern.permute.xlu0 1
        %443 = vperm.xlu0 %442, %v389
        %v444 = vpop.permute.xlu0 %443
        %vm446 = vcmask 261120
        %v448 = vsel %vm446, %v426, 0
        %v451 = vsel %vm446, %v427, 0
        %v454 = vsel %vm446, %v428, 0
        %v457 = vsel %vm446, %v429, 0
        %459 = vmatpush.msra.mxu0 0.0
        %460 = vmatpush.msra.mxu0 0.0
        %461 = vmatpush.msra.mxu0 0.0
        %462 = vmatpush.msra.mxu0 0.0
        %463 = vmatpush.msra.mxu0 0.0
        %464 = vmatpush.msra.mxu0 0.0
        %465 = vmatpush.msra.mxu0 0.0
        %466 = vmatpush.msra.mxu0 0.0
        %467 = vmatpush.msra.mxu0 0.0
        %468 = vmatpush.msra.mxu0 0.0
        %469 = vmatpush.msra.mxu0 0.0
        %470 = vmatpush.msra.mxu0 0.0
        %471 = vmatpush.msra.mxu0 %v424
        %472 = vmatpush.msra.mxu0 %v422
        %473 = vmatpush.msra.mxu0 %v420
        %474 = vmatpush.msra.mxu0 %v418
        %475 = vmatmul.f32.gmra.mxu0 %v448
        %v476 = vpop.f32.mrf.mxu0
        %v477 = vadd.f32 %v432, %v476
        %478 = vmatmul.f32.gmra.mxu0 %v451
        %v479 = vpop.f32.mrf.mxu0
        %v480 = vadd.f32 %v436, %v479
        %481 = vmatmul.f32.gmra.mxu0 %v454
        %v482 = vpop.f32.mrf.mxu0
        %v483 = vadd.f32 %v440, %v482
        %484 = vmatmul.f32.gmra.mxu0 %v457
        %v485 = vpop.f32.mrf.mxu0
        %v486 = vadd.f32 %v444, %v485
        %487 = vdwg.mxu0
        %488 = vmatpush.msra.mxu0 0.0
        %489 = vmatpush.msra.mxu0 0.0
        %490 = vmatpush.msra.mxu0 0.0
        %491 = vmatpush.msra.mxu0 0.0
        %492 = vmatpush.msra.mxu0 0.0
        %493 = vmatpush.msra.mxu0 0.0
        %494 = vmatpush.msra.mxu0 0.0
        %495 = vmatpush.msra.mxu0 0.0
        %496 = vmatpush.msra.mxu0 0.0
        %497 = vmatpush.msra.mxu0 0.0
        %498 = vmatpush.msra.mxu0 0.0
        %499 = vmatpush.msra.mxu0 0.0
        %500 = vmatpush.msra.mxu0 %v425
        %501 = vmatpush.msra.mxu0 %v423
        %502 = vmatpush.msra.mxu0 %v421
        %503 = vmatpush.msra.mxu0 %v419
        %504 = vmatmul.f32.gmra.mxu0 %v448
        %v505 = vpop.f32.mrf.mxu0
        %v506 = vadd.f32 %v432, %v505
        %507 = vmatmul.f32.gmra.mxu0 %v451
        %v508 = vpop.f32.mrf.mxu0
        %v509 = vadd.f32 %v436, %v508
        %510 = vmatmul.f32.gmra.mxu0 %v454
        %v511 = vpop.f32.mrf.mxu0
        %v512 = vadd.f32 %v440, %v511
        %513 = vmatmul.f32.gmra.mxu0 %v457
        %v514 = vpop.f32.mrf.mxu0
        %v515 = vadd.f32 %v444, %v514
        %516 = vdwg.mxu0
        %v517 = vmax.f32 %v477, 0.0
        %v518 = vmax.f32 %v506, 0.0
        %v519 = vmax.f32 %v480, 0.0
        %v520 = vmax.f32 %v509, 0.0
        %v521 = vmax.f32 %v483, 0.0
        %v522 = vmax.f32 %v512, 0.0
        %v523 = vmax.f32 %v486, 0.0
        %v524 = vmax.f32 %v515, 0.0
        %s525 = scalar_lea.vmem [#allocation2], 32
        %v526 = vld [vmem:[%s525] sm:$0xff]
        %v527 = vld [vmem:[%s525 + $0x8] sm:$0xff]
        %v528 = vld [vmem:[%s525 + $0x10] sm:$0xff]
        %v529 = vld [vmem:[%s525 + $0x18] sm:$0xff]
        %530 = vset.pattern.permute.xlu0 2
        %531 = vperm.xlu0 %530, %v386
        %v532 = vpop.permute.xlu0 %531
        %534 = vset.pattern.permute.xlu0 2
        %535 = vperm.xlu0 %534, %v387
        %v536 = vpop.permute.xlu0 %535
        %538 = vset.pattern.permute.xlu0 2
        %539 = vperm.xlu0 %538, %v388
        %v540 = vpop.permute.xlu0 %539
        %542 = vset.pattern.permute.xlu0 2
        %543 = vperm.xlu0 %542, %v389
        %v544 = vpop.permute.xlu0 %543
        %v547 = vsel %vm446, %v526, 0
        %v550 = vsel %vm446, %v527, 0
        %v553 = vsel %vm446, %v528, 0
        %v556 = vsel %vm446, %v529, 0
        %558 = vmatpush.msra.mxu0 0.0
        %559 = vmatpush.msra.mxu0 0.0
        %560 = vmatpush.msra.mxu0 0.0
        %561 = vmatpush.msra.mxu0 0.0
        %562 = vmatpush.msra.mxu0 0.0
        %563 = vmatpush.msra.mxu0 0.0
        %564 = vmatpush.msra.mxu0 0.0
        %565 = vmatpush.msra.mxu0 0.0
        %566 = vmatpush.msra.mxu0 0.0
        %567 = vmatpush.msra.mxu0 0.0
        %568 = vmatpush.msra.mxu0 0.0
        %569 = vmatpush.msra.mxu0 0.0
        %570 = vmatpush.msra.mxu0 %v523
        %571 = vmatpush.msra.mxu0 %v521
        %572 = vmatpush.msra.mxu0 %v519
        %573 = vmatpush.msra.mxu0 %v517
        %574 = vmatmul.f32.gmra.mxu0 %v547
        %v575 = vpop.f32.mrf.mxu0
        %v576 = vadd.f32 %v532, %v575
        %577 = vmatmul.f32.gmra.mxu0 %v550
        %v578 = vpop.f32.mrf.mxu0
        %v579 = vadd.f32 %v536, %v578
        %580 = vmatmul.f32.gmra.mxu0 %v553
        %v581 = vpop.f32.mrf.mxu0
        %v582 = vadd.f32 %v540, %v581
        %583 = vmatmul.f32.gmra.mxu0 %v556
        %v584 = vpop.f32.mrf.mxu0
        %v585 = vadd.f32 %v544, %v584
        %586 = vdwg.mxu0
        %587 = vmatpush.msra.mxu0 0.0
        %588 = vmatpush.msra.mxu0 0.0
        %589 = vmatpush.msra.mxu0 0.0
        %590 = vmatpush.msra.mxu0 0.0
        %591 = vmatpush.msra.mxu0 0.0
        %592 = vmatpush.msra.mxu0 0.0
        %593 = vmatpush.msra.mxu0 0.0
        %594 = vmatpush.msra.mxu0 0.0
        %595 = vmatpush.msra.mxu0 0.0
        %596 = vmatpush.msra.mxu0 0.0
        %597 = vmatpush.msra.mxu0 0.0
        %598 = vmatpush.msra.mxu0 0.0
        %599 = vmatpush.msra.mxu0 %v524
        %600 = vmatpush.msra.mxu0 %v522
        %601 = vmatpush.msra.mxu0 %v520
        %602 = vmatpush.msra.mxu0 %v518
        %603 = vmatmul.f32.gmra.mxu0 %v547
        %v604 = vpop.f32.mrf.mxu0
        %v605 = vadd.f32 %v532, %v604
        %606 = vmatmul.f32.gmra.mxu0 %v550
        %v607 = vpop.f32.mrf.mxu0
        %v608 = vadd.f32 %v536, %v607
        %609 = vmatmul.f32.gmra.mxu0 %v553
        %v610 = vpop.f32.mrf.mxu0
        %v611 = vadd.f32 %v540, %v610
        %612 = vmatmul.f32.gmra.mxu0 %v556
        %v613 = vpop.f32.mrf.mxu0
        %v614 = vadd.f32 %v544, %v613
        %615 = vdwg.mxu0
        %v616 = vmax.f32 %v576, 0.0
        %v617 = vmax.f32 %v605, 0.0
        %v618 = vmax.f32 %v579, 0.0
        %v619 = vmax.f32 %v608, 0.0
        %v620 = vmax.f32 %v582, 0.0
        %v621 = vmax.f32 %v611, 0.0
        %v622 = vmax.f32 %v585, 0.0
        %v623 = vmax.f32 %v614, 0.0
        %s624 = scalar_lea.vmem [#allocation2], 64
        %v625 = vld [vmem:[%s624] sm:$0xff]
        %v626 = vld [vmem:[%s624 + $0x8] sm:$0xff]
        %v627 = vld [vmem:[%s624 + $0x10] sm:$0xff]
        %v628 = vld [vmem:[%s624 + $0x18] sm:$0xff]
        %629 = vset.pattern.permute.xlu0 3
        %630 = vperm.xlu0 %629, %v386
        %v631 = vpop.permute.xlu0 %630
        %633 = vset.pattern.permute.xlu0 3
        %634 = vperm.xlu0 %633, %v387
        %v635 = vpop.permute.xlu0 %634
        %637 = vset.pattern.permute.xlu0 3
        %638 = vperm.xlu0 %637, %v388
        %v639 = vpop.permute.xlu0 %638
        %641 = vset.pattern.permute.xlu0 3
        %642 = vperm.xlu0 %641, %v389
        %v643 = vpop.permute.xlu0 %642
        %v646 = vsel %vm446, %v625, 0
        %v649 = vsel %vm446, %v626, 0
        %v652 = vsel %vm446, %v627, 0
        %v655 = vsel %vm446, %v628, 0
        %657 = vmatpush.msra.mxu0 0.0
        %658 = vmatpush.msra.mxu0 0.0
        %659 = vmatpush.msra.mxu0 0.0
        %660 = vmatpush.msra.mxu0 0.0
        %661 = vmatpush.msra.mxu0 0.0
        %662 = vmatpush.msra.mxu0 0.0
        %663 = vmatpush.msra.mxu0 0.0
        %664 = vmatpush.msra.mxu0 0.0
        %665 = vmatpush.msra.mxu0 0.0
        %666 = vmatpush.msra.mxu0 0.0
        %667 = vmatpush.msra.mxu0 0.0
        %668 = vmatpush.msra.mxu0 0.0
        %669 = vmatpush.msra.mxu0 %v622
        %670 = vmatpush.msra.mxu0 %v620
        %671 = vmatpush.msra.mxu0 %v618
        %672 = vmatpush.msra.mxu0 %v616
        %673 = vmatmul.f32.gmra.mxu0 %v646
        %v674 = vpop.f32.mrf.mxu0
        %v675 = vadd.f32 %v631, %v674
        %676 = vmatmul.f32.gmra.mxu0 %v649
        %v677 = vpop.f32.mrf.mxu0
        %v678 = vadd.f32 %v635, %v677
        %679 = vmatmul.f32.gmra.mxu0 %v652
        %v680 = vpop.f32.mrf.mxu0
        %v681 = vadd.f32 %v639, %v680
        %682 = vmatmul.f32.gmra.mxu0 %v655
        %v683 = vpop.f32.mrf.mxu0
        %v684 = vadd.f32 %v643, %v683
        %685 = vdwg.mxu0
        %686 = vmatpush.msra.mxu0 0.0
        %687 = vmatpush.msra.mxu0 0.0
        %688 = vmatpush.msra.mxu0 0.0
        %689 = vmatpush.msra.mxu0 0.0
        %690 = vmatpush.msra.mxu0 0.0
        %691 = vmatpush.msra.mxu0 0.0
        %692 = vmatpush.msra.mxu0 0.0
        %693 = vmatpush.msra.mxu0 0.0
        %694 = vmatpush.msra.mxu0 0.0
        %695 = vmatpush.msra.mxu0 0.0
        %696 = vmatpush.msra.mxu0 0.0
        %697 = vmatpush.msra.mxu0 0.0
        %698 = vmatpush.msra.mxu0 %v623
        %699 = vmatpush.msra.mxu0 %v621
        %700 = vmatpush.msra.mxu0 %v619
        %701 = vmatpush.msra.mxu0 %v617
        %702 = vmatmul.f32.gmra.mxu0 %v646
        %v703 = vpop.f32.mrf.mxu0
        %v704 = vadd.f32 %v631, %v703
        %705 = vmatmul.f32.gmra.mxu0 %v649
        %v706 = vpop.f32.mrf.mxu0
        %v707 = vadd.f32 %v635, %v706
        %708 = vmatmul.f32.gmra.mxu0 %v652
        %v709 = vpop.f32.mrf.mxu0
        %v710 = vadd.f32 %v639, %v709
        %711 = vmatmul.f32.gmra.mxu0 %v655
        %v712 = vpop.f32.mrf.mxu0
        %v713 = vadd.f32 %v643, %v712
        %714 = vdwg.mxu0
        %v715 = vmax.f32 %v675, 0.0
        %v716 = vmax.f32 %v704, 0.0
        %v717 = vmax.f32 %v678, 0.0
        %v718 = vmax.f32 %v707, 0.0
        %v719 = vmax.f32 %v681, 0.0
        %v720 = vmax.f32 %v710, 0.0
        %v721 = vmax.f32 %v684, 0.0
        %v722 = vmax.f32 %v713, 0.0
        %s723 = scalar_lea.vmem [#allocation2], 96
        %v724 = vld [vmem:[%s723] sm:$0xff]
        %v725 = vld [vmem:[%s723 + $0x8] sm:$0xff]
        %v726 = vld [vmem:[%s723 + $0x10] sm:$0xff]
        %v727 = vld [vmem:[%s723 + $0x18] sm:$0xff]
        %s728 = scalar_lea.vmem %s1, 32
        %v729 = vld [vmem:[%s728] sm:$0xff]
        %v730 = vld [vmem:[%s728 + $0x8] sm:$0xff]
        %v731 = vld [vmem:[%s728 + $0x10] sm:$0xff]
        %v732 = vld [vmem:[%s728 + $0x18] sm:$0xff]
        %734 = vset.pattern.permute.xlu0 0
        %735 = vperm.xlu0 %734, %v729
        %v736 = vpop.permute.xlu0 %735
        %739 = vset.pattern.permute.xlu0 0
        %740 = vperm.xlu0 %739, %v730
        %v741 = vpop.permute.xlu0 %740
        %744 = vset.pattern.permute.xlu0 0
        %745 = vperm.xlu0 %744, %v731
        %v746 = vpop.permute.xlu0 %745
        %749 = vset.pattern.permute.xlu0 0
        %750 = vperm.xlu0 %749, %v732
        %v751 = vpop.permute.xlu0 %750
        %v753 = vmul.f32 %v736, %v300
        %v754 = vmul.f32 %v736, %v301
        %v755 = vmul.f32 %v741, %v300
        %v756 = vmul.f32 %v741, %v301
        %v757 = vmul.f32 %v746, %v300
        %v758 = vmul.f32 %v746, %v301
        %v759 = vmul.f32 %v751, %v300
        %v760 = vmul.f32 %v751, %v301
        %761 = vset.pattern.permute.xlu0 1
        %762 = vperm.xlu0 %761, %v729
        %v763 = vpop.permute.xlu0 %762
        %765 = vset.pattern.permute.xlu0 1
        %766 = vperm.xlu0 %765, %v730
        %v767 = vpop.permute.xlu0 %766
        %769 = vset.pattern.permute.xlu0 1
        %770 = vperm.xlu0 %769, %v731
        %v771 = vpop.permute.xlu0 %770
        %773 = vset.pattern.permute.xlu0 1
        %774 = vperm.xlu0 %773, %v732
        %v775 = vpop.permute.xlu0 %774
        %v777 = vmul.f32 %v763, %v330
        %v778 = vmul.f32 %v763, %v331
        %v779 = vmul.f32 %v767, %v330
        %v780 = vmul.f32 %v767, %v331
        %v781 = vmul.f32 %v771, %v330
        %v782 = vmul.f32 %v771, %v331
        %v783 = vmul.f32 %v775, %v330
        %v784 = vmul.f32 %v775, %v331
        %v785 = vadd.f32 %v753, %v777
        %v786 = vadd.f32 %v754, %v778
        %v787 = vadd.f32 %v755, %v779
        %v788 = vadd.f32 %v756, %v780
        %v789 = vadd.f32 %v757, %v781
        %v790 = vadd.f32 %v758, %v782
        %v791 = vadd.f32 %v759, %v783
        %v792 = vadd.f32 %v760, %v784
        %793 = vset.pattern.permute.xlu0 2
        %794 = vperm.xlu0 %793, %v729
        %v795 = vpop.permute.xlu0 %794
        %797 = vset.pattern.permute.xlu0 2
        %798 = vperm.xlu0 %797, %v730
        %v799 = vpop.permute.xlu0 %798
        %801 = vset.pattern.permute.xlu0 2
        %802 = vperm.xlu0 %801, %v731
        %v803 = vpop.permute.xlu0 %802
        %805 = vset.pattern.permute.xlu0 2
        %806 = vperm.xlu0 %805, %v732
        %v807 = vpop.permute.xlu0 %806
        %v809 = vmul.f32 %v795, %v368
        %v810 = vmul.f32 %v795, %v369
        %v811 = vmul.f32 %v799, %v368
        %v812 = vmul.f32 %v799, %v369
        %v813 = vmul.f32 %v803, %v368
        %v814 = vmul.f32 %v803, %v369
        %v815 = vmul.f32 %v807, %v368
        %v816 = vmul.f32 %v807, %v369
        %v817 = vadd.f32 %v785, %v809
        %v818 = vadd.f32 %v786, %v810
        %v819 = vadd.f32 %v787, %v811
        %v820 = vadd.f32 %v788, %v812
        %v821 = vadd.f32 %v789, %v813
        %v822 = vadd.f32 %v790, %v814
        %v823 = vadd.f32 %v791, %v815
        %v824 = vadd.f32 %v792, %v816
        %v826 = vsel %vm446, %v724, 0
        %v829 = vsel %vm446, %v725, 0
        %v832 = vsel %vm446, %v726, 0
        %v835 = vsel %vm446, %v727, 0
        %837 = vmatpush.msra.mxu0 0.0
        %838 = vmatpush.msra.mxu0 0.0
        %839 = vmatpush.msra.mxu0 0.0
        %840 = vmatpush.msra.mxu0 0.0
        %841 = vmatpush.msra.mxu0 0.0
        %842 = vmatpush.msra.mxu0 0.0
        %843 = vmatpush.msra.mxu0 0.0
        %844 = vmatpush.msra.mxu0 0.0
        %845 = vmatpush.msra.mxu0 0.0
        %846 = vmatpush.msra.mxu0 0.0
        %847 = vmatpush.msra.mxu0 0.0
        %848 = vmatpush.msra.mxu0 0.0
        %849 = vmatpush.msra.mxu0 %v721
        %850 = vmatpush.msra.mxu0 %v719
        %851 = vmatpush.msra.mxu0 %v717
        %852 = vmatpush.msra.mxu0 %v715
        %853 = vmatmul.f32.gmra.mxu0 %v826
        %v854 = vpop.f32.mrf.mxu0
        %v855 = vadd.f32 %v817, %v854
        %856 = vmatmul.f32.gmra.mxu0 %v829
        %v857 = vpop.f32.mrf.mxu0
        %v858 = vadd.f32 %v819, %v857
        %859 = vmatmul.f32.gmra.mxu0 %v832
        %v860 = vpop.f32.mrf.mxu0
        %v861 = vadd.f32 %v821, %v860
        %862 = vmatmul.f32.gmra.mxu0 %v835
        %v863 = vpop.f32.mrf.mxu0
        %v864 = vadd.f32 %v823, %v863
        %865 = vdwg.mxu0
        %866 = vmatpush.msra.mxu0 0.0
        %867 = vmatpush.msra.mxu0 0.0
        %868 = vmatpush.msra.mxu0 0.0
        %869 = vmatpush.msra.mxu0 0.0
        %870 = vmatpush.msra.mxu0 0.0
        %871 = vmatpush.msra.mxu0 0.0
        %872 = vmatpush.msra.mxu0 0.0
        %873 = vmatpush.msra.mxu0 0.0
        %874 = vmatpush.msra.mxu0 0.0
        %875 = vmatpush.msra.mxu0 0.0
        %876 = vmatpush.msra.mxu0 0.0
        %877 = vmatpush.msra.mxu0 0.0
        %878 = vmatpush.msra.mxu0 %v722
        %879 = vmatpush.msra.mxu0 %v720
        %880 = vmatpush.msra.mxu0 %v718
        %881 = vmatpush.msra.mxu0 %v716
        %882 = vmatmul.f32.gmra.mxu0 %v826
        %v883 = vpop.f32.mrf.mxu0
        %v884 = vadd.f32 %v818, %v883
        %885 = vmatmul.f32.gmra.mxu0 %v829
        %v886 = vpop.f32.mrf.mxu0
        %v887 = vadd.f32 %v820, %v886
        %888 = vmatmul.f32.gmra.mxu0 %v832
        %v889 = vpop.f32.mrf.mxu0
        %v890 = vadd.f32 %v822, %v889
        %891 = vmatmul.f32.gmra.mxu0 %v835
        %v892 = vpop.f32.mrf.mxu0
        %v893 = vadd.f32 %v824, %v892
        %894 = vdwg.mxu0
        %895 = vset.pattern.permute.xlu0 4
        %896 = vperm.xlu0 %895, %v386
        %v897 = vpop.permute.xlu0 %896
        %899 = vset.pattern.permute.xlu0 4
        %900 = vperm.xlu0 %899, %v387
        %v901 = vpop.permute.xlu0 %900
        %903 = vset.pattern.permute.xlu0 4
        %904 = vperm.xlu0 %903, %v388
        %v905 = vpop.permute.xlu0 %904
        %907 = vset.pattern.permute.xlu0 4
        %908 = vperm.xlu0 %907, %v389
        %v909 = vpop.permute.xlu0 %908
        %v911 = vadd.f32 %v855, %v897
        %v912 = vadd.f32 %v884, %v897
        %v913 = vadd.f32 %v858, %v901
        %v914 = vadd.f32 %v887, %v901
        %v915 = vadd.f32 %v861, %v905
        %v916 = vadd.f32 %v890, %v905
        %v917 = vadd.f32 %v864, %v909
        %v918 = vadd.f32 %v893, %v909
        %v919 = vmax.f32 %v911, 0.0
        %v920 = vmax.f32 %v912, 0.0
        %v921 = vmax.f32 %v913, 0.0
        %v922 = vmax.f32 %v914, 0.0
        %v923 = vmax.f32 %v915, 0.0
        %v924 = vmax.f32 %v916, 0.0
        %v925 = vmax.f32 %v917, 0.0
        %v926 = vmax.f32 %v918, 0.0
        %s927 = scalar_lea.vmem [#allocation2], 128
        %v928 = vld [vmem:[%s927] sm:$0xff]
        %v929 = vld [vmem:[%s927 + $0x8] sm:$0xff]
        %v930 = vld [vmem:[%s927 + $0x10] sm:$0xff]
        %v931 = vld [vmem:[%s927 + $0x18] sm:$0xff]
        %932 = vset.pattern.permute.xlu0 5
        %933 = vperm.xlu0 %932, %v386
        %v934 = vpop.permute.xlu0 %933
        %936 = vset.pattern.permute.xlu0 5
        %937 = vperm.xlu0 %936, %v387
        %v938 = vpop.permute.xlu0 %937
        %940 = vset.pattern.permute.xlu0 5
        %941 = vperm.xlu0 %940, %v388
        %v942 = vpop.permute.xlu0 %941
        %944 = vset.pattern.permute.xlu0 5
        %945 = vperm.xlu0 %944, %v389
        %v946 = vpop.permute.xlu0 %945
        %v949 = vsel %vm446, %v928, 0
        %v952 = vsel %vm446, %v929, 0
        %v955 = vsel %vm446, %v930, 0
        %v958 = vsel %vm446, %v931, 0
        %960 = vmatpush.msra.mxu0 0.0
        %961 = vmatpush.msra.mxu0 0.0
        %962 = vmatpush.msra.mxu0 0.0
        %963 = vmatpush.msra.mxu0 0.0
        %964 = vmatpush.msra.mxu0 0.0
        %965 = vmatpush.msra.mxu0 0.0
        %966 = vmatpush.msra.mxu0 0.0
        %967 = vmatpush.msra.mxu0 0.0
        %968 = vmatpush.msra.mxu0 0.0
        %969 = vmatpush.msra.mxu0 0.0
        %970 = vmatpush.msra.mxu0 0.0
        %971 = vmatpush.msra.mxu0 0.0
        %972 = vmatpush.msra.mxu0 %v925
        %973 = vmatpush.msra.mxu0 %v923
        %974 = vmatpush.msra.mxu0 %v921
        %975 = vmatpush.msra.mxu0 %v919
        %976 = vmatmul.f32.gmra.mxu0 %v949
        %v977 = vpop.f32.mrf.mxu0
        %v978 = vadd.f32 %v934, %v977
        %979 = vmatmul.f32.gmra.mxu0 %v952
        %v980 = vpop.f32.mrf.mxu0
        %v981 = vadd.f32 %v938, %v980
        %982 = vmatmul.f32.gmra.mxu0 %v955
        %v983 = vpop.f32.mrf.mxu0
        %v984 = vadd.f32 %v942, %v983
        %985 = vmatmul.f32.gmra.mxu0 %v958
        %v986 = vpop.f32.mrf.mxu0
        %v987 = vadd.f32 %v946, %v986
        %988 = vdwg.mxu0
        %989 = vmatpush.msra.mxu0 0.0
        %990 = vmatpush.msra.mxu0 0.0
        %991 = vmatpush.msra.mxu0 0.0
        %992 = vmatpush.msra.mxu0 0.0
        %993 = vmatpush.msra.mxu0 0.0
        %994 = vmatpush.msra.mxu0 0.0
        %995 = vmatpush.msra.mxu0 0.0
        %996 = vmatpush.msra.mxu0 0.0
        %997 = vmatpush.msra.mxu0 0.0
        %998 = vmatpush.msra.mxu0 0.0
        %999 = vmatpush.msra.mxu0 0.0
        %1000 = vmatpush.msra.mxu0 0.0
        %1001 = vmatpush.msra.mxu0 %v926
        %1002 = vmatpush.msra.mxu0 %v924
        %1003 = vmatpush.msra.mxu0 %v922
        %1004 = vmatpush.msra.mxu0 %v920
        %1005 = vmatmul.f32.gmra.mxu0 %v949
        %v1006 = vpop.f32.mrf.mxu0
        %v1007 = vadd.f32 %v934, %v1006
        %1008 = vmatmul.f32.gmra.mxu0 %v952
        %v1009 = vpop.f32.mrf.mxu0
        %v1010 = vadd.f32 %v938, %v1009
        %1011 = vmatmul.f32.gmra.mxu0 %v955
        %v1012 = vpop.f32.mrf.mxu0
        %v1013 = vadd.f32 %v942, %v1012
        %1014 = vmatmul.f32.gmra.mxu0 %v958
        %v1015 = vpop.f32.mrf.mxu0
        %v1016 = vadd.f32 %v946, %v1015
        %1017 = vdwg.mxu0
        %v1018 = vmax.f32 %v978, 0.0
        %v1019 = vmax.f32 %v1007, 0.0
        %v1020 = vmax.f32 %v981, 0.0
        %v1021 = vmax.f32 %v1010, 0.0
        %v1022 = vmax.f32 %v984, 0.0
        %v1023 = vmax.f32 %v1013, 0.0
        %v1024 = vmax.f32 %v987, 0.0
        %v1025 = vmax.f32 %v1016, 0.0
        %s1026 = scalar_lea.vmem [#allocation2], 160
        %v1027 = vld [vmem:[%s1026] sm:$0xff]
        %v1028 = vld [vmem:[%s1026 + $0x8] sm:$0xff]
        %v1029 = vld [vmem:[%s1026 + $0x10] sm:$0xff]
        %v1030 = vld [vmem:[%s1026 + $0x18] sm:$0xff]
        %1031 = vset.pattern.permute.xlu0 6
        %1032 = vperm.xlu0 %1031, %v386
        %v1033 = vpop.permute.xlu0 %1032
        %1035 = vset.pattern.permute.xlu0 6
        %1036 = vperm.xlu0 %1035, %v387
        %v1037 = vpop.permute.xlu0 %1036
        %1039 = vset.pattern.permute.xlu0 6
        %1040 = vperm.xlu0 %1039, %v388
        %v1041 = vpop.permute.xlu0 %1040
        %1043 = vset.pattern.permute.xlu0 6
        %1044 = vperm.xlu0 %1043, %v389
        %v1045 = vpop.permute.xlu0 %1044
        %v1048 = vsel %vm446, %v1027, 0
        %v1051 = vsel %vm446, %v1028, 0
        %v1054 = vsel %vm446, %v1029, 0
        %v1057 = vsel %vm446, %v1030, 0
        %1059 = vmatpush.msra.mxu0 0.0
        %1060 = vmatpush.msra.mxu0 0.0
        %1061 = vmatpush.msra.mxu0 0.0
        %1062 = vmatpush.msra.mxu0 0.0
        %1063 = vmatpush.msra.mxu0 0.0
        %1064 = vmatpush.msra.mxu0 0.0
        %1065 = vmatpush.msra.mxu0 0.0
        %1066 = vmatpush.msra.mxu0 0.0
        %1067 = vmatpush.msra.mxu0 0.0
        %1068 = vmatpush.msra.mxu0 0.0
        %1069 = vmatpush.msra.mxu0 0.0
        %1070 = vmatpush.msra.mxu0 0.0
        %1071 = vmatpush.msra.mxu0 %v1024
        %1072 = vmatpush.msra.mxu0 %v1022
        %1073 = vmatpush.msra.mxu0 %v1020
        %1074 = vmatpush.msra.mxu0 %v1018
        %1075 = vmatmul.f32.gmra.mxu0 %v1048
        %v1076 = vpop.f32.mrf.mxu0
        %v1077 = vadd.f32 %v1033, %v1076
        %1078 = vmatmul.f32.gmra.mxu0 %v1051
        %v1079 = vpop.f32.mrf.mxu0
        %v1080 = vadd.f32 %v1037, %v1079
        %1081 = vmatmul.f32.gmra.mxu0 %v1054
        %v1082 = vpop.f32.mrf.mxu0
        %v1083 = vadd.f32 %v1041, %v1082
        %1084 = vmatmul.f32.gmra.mxu0 %v1057
        %v1085 = vpop.f32.mrf.mxu0
        %v1086 = vadd.f32 %v1045, %v1085
        %1087 = vdwg.mxu0
        %1088 = vmatpush.msra.mxu0 0.0
        %1089 = vmatpush.msra.mxu0 0.0
        %1090 = vmatpush.msra.mxu0 0.0
        %1091 = vmatpush.msra.mxu0 0.0
        %1092 = vmatpush.msra.mxu0 0.0
        %1093 = vmatpush.msra.mxu0 0.0
        %1094 = vmatpush.msra.mxu0 0.0
        %1095 = vmatpush.msra.mxu0 0.0
        %1096 = vmatpush.msra.mxu0 0.0
        %1097 = vmatpush.msra.mxu0 0.0
        %1098 = vmatpush.msra.mxu0 0.0
        %1099 = vmatpush.msra.mxu0 0.0
        %1100 = vmatpush.msra.mxu0 %v1025
        %1101 = vmatpush.msra.mxu0 %v1023
        %1102 = vmatpush.msra.mxu0 %v1021
        %1103 = vmatpush.msra.mxu0 %v1019
        %1104 = vmatmul.f32.gmra.mxu0 %v1048
        %v1105 = vpop.f32.mrf.mxu0
        %v1106 = vadd.f32 %v1033, %v1105
        %1107 = vmatmul.f32.gmra.mxu0 %v1051
        %v1108 = vpop.f32.mrf.mxu0
        %v1109 = vadd.f32 %v1037, %v1108
        %1110 = vmatmul.f32.gmra.mxu0 %v1054
        %v1111 = vpop.f32.mrf.mxu0
        %v1112 = vadd.f32 %v1041, %v1111
        %1113 = vmatmul.f32.gmra.mxu0 %v1057
        %v1114 = vpop.f32.mrf.mxu0
        %v1115 = vadd.f32 %v1045, %v1114
        %1116 = vdwg.mxu0
        %v1117 = vmax.f32 %v1077, 0.0
        %v1118 = vmax.f32 %v1106, 0.0
        %v1119 = vmax.f32 %v1080, 0.0
        %v1120 = vmax.f32 %v1109, 0.0
        %v1121 = vmax.f32 %v1083, 0.0
        %v1122 = vmax.f32 %v1112, 0.0
        %v1123 = vmax.f32 %v1086, 0.0
        %v1124 = vmax.f32 %v1115, 0.0
        %s1125 = scalar_lea.vmem [#allocation2], 192
        %v1126 = vld [vmem:[%s1125] sm:$0xff]
        %v1127 = vld [vmem:[%s1125 + $0x8] sm:$0xff]
        %v1128 = vld [vmem:[%s1125 + $0x10] sm:$0xff]
        %v1129 = vld [vmem:[%s1125 + $0x18] sm:$0xff]
        %1130 = vset.pattern.permute.xlu0 7
        %1131 = vperm.xlu0 %1130, %v386
        %v1132 = vpop.permute.xlu0 %1131
        %1134 = vset.pattern.permute.xlu0 7
        %1135 = vperm.xlu0 %1134, %v387
        %v1136 = vpop.permute.xlu0 %1135
        %1138 = vset.pattern.permute.xlu0 7
        %1139 = vperm.xlu0 %1138, %v388
        %v1140 = vpop.permute.xlu0 %1139
        %1142 = vset.pattern.permute.xlu0 7
        %1143 = vperm.xlu0 %1142, %v389
        %v1144 = vpop.permute.xlu0 %1143
        %v1147 = vsel %vm446, %v1126, 0
        %v1150 = vsel %vm446, %v1127, 0
        %v1153 = vsel %vm446, %v1128, 0
        %v1156 = vsel %vm446, %v1129, 0
        %1158 = vmatpush.msra.mxu0 0.0
        %1159 = vmatpush.msra.mxu0 0.0
        %1160 = vmatpush.msra.mxu0 0.0
        %1161 = vmatpush.msra.mxu0 0.0
        %1162 = vmatpush.msra.mxu0 0.0
        %1163 = vmatpush.msra.mxu0 0.0
        %1164 = vmatpush.msra.mxu0 0.0
        %1165 = vmatpush.msra.mxu0 0.0
        %1166 = vmatpush.msra.mxu0 0.0
        %1167 = vmatpush.msra.mxu0 0.0
        %1168 = vmatpush.msra.mxu0 0.0
        %1169 = vmatpush.msra.mxu0 0.0
        %1170 = vmatpush.msra.mxu0 %v1123
        %1171 = vmatpush.msra.mxu0 %v1121
        %1172 = vmatpush.msra.mxu0 %v1119
        %1173 = vmatpush.msra.mxu0 %v1117
        %1174 = vmatmul.f32.gmra.mxu0 %v1147
        %v1175 = vpop.f32.mrf.mxu0
        %v1176 = vadd.f32 %v1132, %v1175
        %1177 = vmatmul.f32.gmra.mxu0 %v1150
        %v1178 = vpop.f32.mrf.mxu0
        %v1179 = vadd.f32 %v1136, %v1178
        %1180 = vmatmul.f32.gmra.mxu0 %v1153
        %v1181 = vpop.f32.mrf.mxu0
        %v1182 = vadd.f32 %v1140, %v1181
        %1183 = vmatmul.f32.gmra.mxu0 %v1156
        %v1184 = vpop.f32.mrf.mxu0
        %v1185 = vadd.f32 %v1144, %v1184
        %1186 = vdwg.mxu0
        %1187 = vmatpush.msra.mxu0 0.0
        %1188 = vmatpush.msra.mxu0 0.0
        %1189 = vmatpush.msra.mxu0 0.0
        %1190 = vmatpush.msra.mxu0 0.0
        %1191 = vmatpush.msra.mxu0 0.0
        %1192 = vmatpush.msra.mxu0 0.0
        %1193 = vmatpush.msra.mxu0 0.0
        %1194 = vmatpush.msra.mxu0 0.0
        %1195 = vmatpush.msra.mxu0 0.0
        %1196 = vmatpush.msra.mxu0 0.0
        %1197 = vmatpush.msra.mxu0 0.0
        %1198 = vmatpush.msra.mxu0 0.0
        %1199 = vmatpush.msra.mxu0 %v1124
        %1200 = vmatpush.msra.mxu0 %v1122
        %1201 = vmatpush.msra.mxu0 %v1120
        %1202 = vmatpush.msra.mxu0 %v1118
        %1203 = vmatmul.f32.gmra.mxu0 %v1147
        %v1204 = vpop.f32.mrf.mxu0
        %v1205 = vadd.f32 %v1132, %v1204
        %1206 = vmatmul.f32.gmra.mxu0 %v1150
        %v1207 = vpop.f32.mrf.mxu0
        %v1208 = vadd.f32 %v1136, %v1207
        %1209 = vmatmul.f32.gmra.mxu0 %v1153
        %v1210 = vpop.f32.mrf.mxu0
        %v1211 = vadd.f32 %v1140, %v1210
        %1212 = vmatmul.f32.gmra.mxu0 %v1156
        %v1213 = vpop.f32.mrf.mxu0
        %v1214 = vadd.f32 %v1144, %v1213
        %1215 = vdwg.mxu0
        %v1216 = vmax.f32 %v1176, 0.0
        %v1217 = vmax.f32 %v1205, 0.0
        %v1218 = vmax.f32 %v1179, 0.0
        %v1219 = vmax.f32 %v1208, 0.0
        %v1220 = vmax.f32 %v1182, 0.0
        %v1221 = vmax.f32 %v1211, 0.0
        %v1222 = vmax.f32 %v1185, 0.0
        %v1223 = vmax.f32 %v1214, 0.0
        %v1224 = vld [vmem:[%s4] sm:$0x7]
        %v1225 = vld [vmem:[%s5] sm:$0x7]
        %1227 = vset.pattern.permute.xlu0 0
        %1228 = vperm.xlu0 %1227, %v1225
        %v1229 = vpop.permute.xlu0 %1228
        %v1232 = vsel %vm446, %v1224, 0
        %1234 = vmatpush.msra.mxu0 0.0
        %1235 = vmatpush.msra.mxu0 0.0
        %1236 = vmatpush.msra.mxu0 0.0
        %1237 = vmatpush.msra.mxu0 0.0
        %1238 = vmatpush.msra.mxu0 0.0
        %1239 = vmatpush.msra.mxu0 0.0
        %1240 = vmatpush.msra.mxu0 0.0
        %1241 = vmatpush.msra.mxu0 0.0
        %1242 = vmatpush.msra.mxu0 0.0
        %1243 = vmatpush.msra.mxu0 0.0
        %1244 = vmatpush.msra.mxu0 0.0
        %1245 = vmatpush.msra.mxu0 0.0
        %1246 = vmatpush.msra.mxu0 %v1222
        %1247 = vmatpush.msra.mxu0 %v1220
        %1248 = vmatpush.msra.mxu0 %v1218
        %1249 = vmatpush.msra.mxu0 %v1216
        %1250 = vmatmul.f32.gmra.mxu0 %v1232
        %v1251 = vpop.f32.mrf.mxu0
        %v1252 = vadd.f32 %v1229, %v1251
        %1253 = vdwg.mxu0
        %1254 = vmatpush.msra.mxu0 0.0
        %1255 = vmatpush.msra.mxu0 0.0
        %1256 = vmatpush.msra.mxu0 0.0
        %1257 = vmatpush.msra.mxu0 0.0
        %1258 = vmatpush.msra.mxu0 0.0
        %1259 = vmatpush.msra.mxu0 0.0
        %1260 = vmatpush.msra.mxu0 0.0
        %1261 = vmatpush.msra.mxu0 0.0
        %1262 = vmatpush.msra.mxu0 0.0
        %1263 = vmatpush.msra.mxu0 0.0
        %1264 = vmatpush.msra.mxu0 0.0
        %1265 = vmatpush.msra.mxu0 0.0
        %1266 = vmatpush.msra.mxu0 %v1223
        %1267 = vmatpush.msra.mxu0 %v1221
        %1268 = vmatpush.msra.mxu0 %v1219
        %1269 = vmatpush.msra.mxu0 %v1217
        %1270 = vmatmul.f32.gmra.mxu0 %v1232
        %v1271 = vpop.f32.mrf.mxu0
        %v1272 = vadd.f32 %v1229, %v1271
        %1273 = vdwg.mxu0
        %v1276 = vrot.slane %v1272, 4
        %vm1277 = vcmask 1043456
        %v1278 = vsel %vm1277, %v1252, %v1276
        %v1280 = vadd.f32 %v270, %v1278
        %1281 = vst [vmem:[%s262] sm:$0x77] %v1280
        %s1282 = sand.u32 %s160, 1
        %s1283 = scalar_lea.sflag [#allocation4], %s1282
        %s1284 = sand.u32 %s160, 1
        %s1285 = smul.addr %s1284, 8
        %s1286 = scalar_lea.vmem [#allocation5], %s1285
        // Predicated region
        $region49: #{tpu_custom_call.1} parent=43 // pred_check
          %p1287 = pneg %p170
        $region50: #{tpu_custom_call.1} parent=43 // pred_check_branch
          %1289 = sbr.rel (%p1287) target = $region52
        $region51: #{tpu_custom_call.1} parent=43 // pred_region
          %s1290 = smul.u32 2, %s21
          %1292 = vsyncadd %s1283, 0
          %s1293 = smul.addr %s1290, 4
          %s1294 = scalar_lea.hbm %s6, %s1293
          %s1296 = sshll.u32 %s1286, 4
          %s1297 = int_to_ptr.vmem [resolvable:$true] %s1296
          %s1298 = sshll.u32 %s1294, 4
          %s1299 = int_to_ptr.hbm [resolvable:$true] %s1298
          %1301 = dma.vmem_to_hbm [thread:$0]  %s1297, 128, %s1299, %s1283
        $region52: #{tpu_custom_call.1} parent=43 // pred_fallthru
          _
      $region44: #{tpu_custom_call.1} parent=5 // pred_fallthru
        _
      %p1302 = scmp.le.s32.totalorder 2, %s16
      // Predicated region
      $region53: #{tpu_custom_call.1} parent=5 // pred_check
        %p1303 = pneg %p1302
      $region54: #{tpu_custom_call.1} parent=5 // pred_check_branch
        %1305 = sbr.rel (%p1303) target = $region56
      $region55: #{tpu_custom_call.1} parent=5 // pred_region
        %s1306 = ssub.s32 %s16, 2
        // Predicated region
        $region57: #{tpu_custom_call.1} parent=55 // pred_check
          %p1307 = pneg %p176
        $region58: #{tpu_custom_call.1} parent=55 // pred_check_branch
          %1309 = sbr.rel (%p1307) target = $region60
        $region59: #{tpu_custom_call.1} parent=55 // pred_region
          %s1310 = sand.u32 %s161, 1
          %s1311 = scalar_lea.sflag [#allocation4], %s1310
          %s1312 = sand.u32 %s161, 1
          %s1313 = smul.addr %s1312, 8
          %s1314 = scalar_lea.vmem [#allocation5], %s1313
          %1316 = dma.done %s1311, 128
        $region60: #{tpu_custom_call.1} parent=55 // pred_fallthru
          _
      $region56: #{tpu_custom_call.1} parent=5 // pred_fallthru
        _
    $region6: #{tpu_custom_call.1} parent=1 // loop_footer
      %s20 = sadd.s32 1, %s16
    $region7: #{tpu_custom_call.1} parent=1 // loop_footer_branch
      %15 = sbr.rel target = $region3
    $region8: #{tpu_custom_call.1} parent=1 // loop_exit
      _
    %1317 = vsyncpa [#allocation3], 1
    %s1318 = scalar_lea.sflag [#allocation3], 1
    %1319 = vsyncpa %s1318, 1
    %1320 = vsyncpa [#allocation4], 1
    %s1321 = scalar_lea.sflag [#allocation4], 1
    %1322 = vsyncpa %s1321, 1

</llo_original>
